<compile_context>
chip_gen: v7x
topology: tpu7x:2x2x1
jax: 0.10.0
libtpu: 0.0.40
codegen_flags: <defaults>
</compile_context>

<pallas_src>
import math

import jax
import jax.numpy as jnp
from jax.experimental import pallas as pl
from jax.experimental.pallas import tpu as pltpu

_LANE = 128


def _round_up(x, m):
    return ((x + m - 1) // m) * m


def _cdiv(a, b):
    return (a + b - 1) // b


def _sublane_quantum(itemsize):
    # f32 -> 8 rows, bf16/f16 -> 16, int8/fp8 -> 32 (native sublane packing).
    return max(8, 32 // int(itemsize))


def _default_budget_bytes():
    # Total pipelined-buffer budget (in + out tiles, double-buffered), kept
    # inside every generation's default scoped-VMEM limit (16 MiB v5e,
    # 32 MiB v6e/v7x) so no compiler flags are needed.
    try:
        vmem = pltpu.get_tpu_info().vmem_capacity_bytes
    except Exception:  # pragma: no cover - conservative fallback off-TPU
        vmem = 128 << 20
    if vmem <= (64 << 20):
        # v7x: 64 MiB physical per TC, 32 MiB scoped default -> bigger tiles
        # to amortize the ~0.35us/step overhead against 3.2 TB/s HBM.
        return 16 << 20
    # v5e/v6e (128 MiB physical; v5e scoped default is only 16 MiB).
    return 8 << 20


def _choose_tile_s(S, q, bytes_per_row, budget_bytes):
    """Largest ts (multiple of q) whose pipelined VMEM footprint fits the
    budget (`bytes_per_row` already includes in+out, padded, double-buffered).
    Caps ts so the grid has >= 2 steps whenever S allows, and prefers a ts
    that divides S exactly (no padding needed)."""
    max_ts = max(q, (budget_bytes // max(1, bytes_per_row)) // q * q)
    # Guarantee >= 2 grid steps when S is big enough to split (v7x megacore).
    max_ts = min(max_ts, max(q, _round_up(_cdiv(S, 2), q)))
    ts = max_ts
    while ts >= q:
        if S % ts == 0:
            return ts
        ts -= q
    # No aligned divisor under the cap: pad S up to a multiple of max_ts.
    return max_ts


# ----------------------------------------------------------------------------
# Kernels
# ----------------------------------------------------------------------------

def _copy_kernel(x_ref, o_ref):
    # Pure copy: the (seq, batch) swap is done entirely by BlockSpec
    # addressing.  x_ref: (ts, H)  ->  o_ref: (1, ts, H)
    o_ref[...] = x_ref[...][None, :, :]


def _swap_flat_kernel(x_ref, o_ref):
    # Small-H path: (ts, B, H) -> (B, ts, H) -> lane-dense (B, ts*H).
    ts, b, h = x_ref.shape
    o_ref[...] = jnp.swapaxes(x_ref[...], 0, 1).reshape(b, ts * h)


# ----------------------------------------------------------------------------
# Wrappers
# ----------------------------------------------------------------------------

def _transpose_lane_aligned(x, budget_bytes):
    """H % 128 == 0: DMA-only transpose via a (S, B*H) view of the input."""
    S, B, H = x.shape
    isz = int(x.dtype.itemsize)
    sub = _sublane_quantum(isz)
    # Padded per-seq-row bytes: in tile (ts, H) + out tile (1, ts, H), x2 for
    # double buffering.  H is already a multiple of 128, ts a multiple of sub.
    bytes_per_row = 4 * H * isz
    ts = _choose_tile_s(S, sub, bytes_per_row, budget_bytes)
    s_pad = _round_up(S, ts)
    xp = x if s_pad == S else jnp.pad(x, ((0, s_pad - S), (0, 0), (0, 0)))
    x2 = xp.reshape(s_pad, B * H)  # contiguous view; free reshape
    grid = (s_pad // ts, B)

    out = pl.pallas_call(
        _copy_kernel,
        out_shape=jax.ShapeDtypeStruct((B, s_pad, H), x.dtype),
        grid_spec=pltpu.PrefetchScalarGridSpec(
            num_scalar_prefetch=0,
            grid=grid,
            in_specs=[pl.BlockSpec((ts, H), lambda i, j: (i, j))],
            out_specs=pl.BlockSpec((1, ts, H), lambda i, j: (j, i, 0)),
        ),
        compiler_params=pltpu.CompilerParams(
            dimension_semantics=("parallel", "parallel"),
        ),
        cost_estimate=pl.CostEstimate(
            flops=0, transcendentals=0, bytes_accessed=2 * S * B * H * isz),
    )(x2)
    return out if s_pad == S else out[:, :S, :]


def _transpose_small_h(x, budget_bytes):
    """H not lane-aligned: in-kernel relayout with a lane-dense (B, S*H) output."""
    S, B, H = x.shape
    isz = int(x.dtype.itemsize)
    sub = _sublane_quantum(isz)
    # Smallest ts such that ts*H is a multiple of 128 (unmasked output stores).
    q = _LANE // math.gcd(H, _LANE)
    # Padded per-seq-row bytes (input block (ts, B, H): trailing (B, H) pads
    # to (sub, 128); output block (B, ts*H) is lane-dense), x2 double-buffer.
    in_row = _round_up(B, sub) * _round_up(H, _LANE) * isz
    out_row = _round_up(B, sub) * H * isz
    bytes_per_row = 2 * (in_row + out_row)
    ts = _choose_tile_s(S, q, bytes_per_row, budget_bytes)
    s_pad = _round_up(S, ts)
    xp = x if s_pad == S else jnp.pad(x, ((0, s_pad - S), (0, 0), (0, 0)))
    grid = (s_pad // ts,)

    out = pl.pallas_call(
        _swap_flat_kernel,
        out_shape=jax.ShapeDtypeStruct((B, s_pad * H), x.dtype),
        grid_spec=pltpu.PrefetchScalarGridSpec(
            num_scalar_prefetch=0,
            grid=grid,
            in_specs=[pl.BlockSpec((ts, B, H), lambda i: (i, 0, 0))],
            out_specs=pl.BlockSpec((B, ts * H), lambda i: (0, i)),
        ),
        compiler_params=pltpu.CompilerParams(
            dimension_semantics=("parallel",),
        ),
        cost_estimate=pl.CostEstimate(
            flops=0, transcendentals=0, bytes_accessed=2 * S * B * H * isz),
    )(xp)
    out = out.reshape(B, s_pad, H)
    return out if s_pad == S else out[:, :S, :]


def transpose_first_two(x, *, budget_bytes=None):
    """Pallas equivalent of torch.Tensor.transpose(1, 0) on a 3-D (S, B, H) tensor."""
    if budget_bytes is None:
        budget_bytes = _default_budget_bytes()
    S, B, H = x.shape
    if H % _LANE == 0:
        return _transpose_lane_aligned(x, budget_bytes)
    return _transpose_small_h(x, budget_bytes)


if __name__ == "__main__":
    key = jax.random.PRNGKey(0)

    # Primary shape consistent with (seq, batch, hidden) TransformerEncoder use.
    S, B, H = 8, 2, 32
    x = jax.random.normal(key, (S, B, H), dtype=jnp.float32)
    y = jax.block_until_ready(transpose_first_two(x))
    assert y.shape == (B, S, H), y.shape
    assert jnp.array_equal(y, jnp.swapaxes(x, 0, 1)), "small-H path mismatch"

    # Lane-aligned hidden: exercises the pure-DMA (no in-kernel relayout) path.
    S2, B2, H2 = 16, 2, 128
    x2 = jax.random.normal(jax.random.PRNGKey(1), (S2, B2, H2), dtype=jnp.float32)
    y2 = jax.block_until_ready(transpose_first_two(x2))
    assert y2.shape == (B2, S2, H2), y2.shape
    assert jnp.array_equal(y2, jnp.swapaxes(x2, 0, 1)), "DMA-only path mismatch"

    # Ragged seq length + bf16: exercises wrapper-side padding and the
    # dtype-aware sublane quantum.
    S3, B3, H3 = 10, 2, 32
    x3 = jax.random.normal(jax.random.PRNGKey(2), (S3, B3, H3), dtype=jnp.bfloat16)
    y3 = jax.block_until_ready(transpose_first_two(x3))
    assert y3.shape == (B3, S3, H3), y3.shape
    assert jnp.array_equal(y3, jnp.swapaxes(x3, 0, 1)), "ragged/bf16 path mismatch"

    print("KERNEL_OK")
</pallas_src>

<mosaic_0001>
module attributes {stable_mosaic.version = 11 : i64} {
  func.func @_swap_flat_kernel(%arg0: i32, %arg1: memref<4x2x32xf32, #tpu.memory_space<vmem>>, %arg2: memref<2x128xf32, #tpu.memory_space<vmem>>) attributes {dimension_semantics = [#tpu.dimension_semantics<parallel>], iteration_bounds = array<i64: 2>, scalar_prefetch = 0 : i64, scratch_operands = 0 : i64, tpu.core_type = #tpu.core_type<tc>, window_params = [{transform_indices = @transform_0, window_bounds = array<i64: 4, 2, 32>}, {transform_indices = @transform_1, window_bounds = array<i64: 2, 128>}]} {
    %c0 = arith.constant 0 : index
    %c0_0 = arith.constant 0 : index
    %c0_1 = arith.constant 0 : index
    %0 = vector.load %arg1[%c0, %c0_0, %c0_1] : memref<4x2x32xf32, #tpu.memory_space<vmem>>, vector<4x2x32xf32>
    %1 = tpu.transpose %0, [1, 0, 2] : vector<4x2x32xf32> -> vector<2x4x32xf32>
    %2 = vector.shape_cast %1 : vector<2x4x32xf32> to vector<2x128xf32>
    %c0_2 = arith.constant 0 : index
    %c0_3 = arith.constant 0 : index
    %3 = vector.load %arg2[%c0_2, %c0_3] : memref<2x128xf32, #tpu.memory_space<vmem>>, vector<2x128xf32>
    tpu.vector_store %arg2[%c0_2, %c0_3], %2 {strides = array<i32>} : memref<2x128xf32, #tpu.memory_space<vmem>>, vector<2x128xf32>,
    return
  }
  func.func @transform_0(%arg0: i32) -> (i32, i32, i32) {
    %c0_i32 = arith.constant 0 : i32
    %c0_i32_0 = arith.constant 0 : i32
    %c0_i32_1 = arith.constant 0 : i32
    return %arg0, %c0_i32, %c0_i32_0 : i32, i32, i32
  }
  func.func @transform_1(%arg0: i32) -> (i32, i32) {
    %c0_i32 = arith.constant 0 : i32
    %c0_i32_0 = arith.constant 0 : i32
    return %c0_i32, %arg0 : i32, i32
  }
}

</mosaic_0001>

<llo_original>
// kernel: tpu_custom_call.1
$region0: #{tpu_custom_call.1}
  #allocation0 [shape = 'u32[]', space=smem, size = 0x4, offset = 0x4, fixed_abs, tag = 'smem constant byte address 0x4 - core index']
  #allocation1 [shape = 'u32[144,128]{1,0:T(1,128)}', space=vmem, size = 0x12000, scoped, tag = 'internal scratch']
  %s0 = inlined_call_operand.hbm [shape: f32[8,2,32], index: 0, kind: input, shape index: {}]
  %s1 = inlined_call_operand.hbm [shape: f32[2,256], index: 1, kind: output, shape index: {}]
  %s2 = sld [smem:[#allocation0]]
  $region41: #{tpu_custom_call.1} parent=0
    _
  %s4 = ssub.s32 1, %s2
  %s5 = scalar_select 0, %s4, %s2
  $region1: #{tpu_custom_call.1} parent=0
    #allocation2 [shape = 'u8[8192]{0}', space=vmem, size = 0x2000, scoped, tag = 'input window, operand 0']
    #allocation3 [shape = 's32[2]{0}', space=sflag, size = 0x8, scoped, tag = 'scoped memory for tpu_custom_call.1']
    #allocation4 [shape = 's32[2]{0}', space=sflag, size = 0x8, scoped, tag = 'scoped memory for tpu_custom_call.1']
    #allocation5 [shape = 'u8[2048]{0}', space=vmem, size = 0x800, scoped, tag = 'output window, operand 0']
    %6 = vsyncpa [#allocation3], 0
    %s7 = scalar_lea.sflag [#allocation3], 1
    %8 = vsyncpa %s7, 0
    %9 = vsyncpa [#allocation4], 0
    %s10 = scalar_lea.sflag [#allocation4], 1
    %11 = vsyncpa %s10, 0
    loop: start=0, step=1, limit=4
    $region2: #{tpu_custom_call.1} parent=1 // loop_pre_header
      _
    $region3: #{tpu_custom_call.1} parent=1 // loop_header
      %s13 = sphi 0, %s17
      %p14 = scmp.ge.s32.totalorder %s13, 4
      %s23 = sphi 0, %s25
      %s26 = sphi 0, %s23
      %s27 = sphi 0, %s26
      %s43 = sphi 0, %s27
      %s49 = sphi 0, %s51
      %s52 = sphi 0, %s49
      %s53 = sphi 0, %s52
      %s69 = sphi 0, %s53
    $region4: #{tpu_custom_call.1} parent=1 // loop_header_branch
      %16 = sbr.rel (%p14) target = $region8
    $region5: #{tpu_custom_call.1} parent=1 // loop_body
      %s18 = ssub.s32 %s13, 1
      %s19 = ssub.s32 %s13, 2
      %s20 = sadd.s32 %s13, 1
      %s21 = ssub.s32 %s13, %s20
      %p22 = scmp.eq.s32.totalorder %s21, 0
      %s24 = sadd.s32 %s23, 1
      %s25 = scalar_select %p22, %s23, %s24
      %p28 = pneg %p22
      %p29 = scmp.eq.s32.totalorder %s13, 1
      %p30 = por %p28, %p29
      %p31 = scmp.ne.s32.totalorder %s23, %s26
      %p32 = scmp.eq.s32.totalorder %s13, 0
      %p33 = por %p31, %p32
      %p34 = scmp.ne.s32.totalorder %s23, %s26
      %p35 = scmp.eq.s32.totalorder %s18, 1
      %p36 = por %p34, %p35
      %p37 = scmp.ne.s32.totalorder %s26, %s27
      %p38 = scmp.eq.s32.totalorder %s18, 0
      %p39 = por %p37, %p38
      %p40 = scmp.ne.s32.totalorder %s26, %s27
      %p41 = scmp.eq.s32.totalorder %s19, 1
      %p42 = por %p40, %p41
      %p44 = scmp.ne.s32.totalorder %s27, %s43
      %p45 = scmp.eq.s32.totalorder %s19, 0
      %p46 = por %p44, %p45
      %s47 = ssub.s32 %s13, %s20
      %p48 = scmp.eq.s32.totalorder %s47, 0
      %s50 = sadd.s32 %s49, 1
      %s51 = scalar_select %p48, %s49, %s50
      %p54 = pneg %p48
      %p55 = scmp.eq.s32.totalorder %s13, 1
      %p56 = por %p54, %p55
      %p57 = scmp.ne.s32.totalorder %s49, %s52
      %p58 = scmp.eq.s32.totalorder %s13, 0
      %p59 = por %p57, %p58
      %p60 = scmp.ne.s32.totalorder %s49, %s52
      %p61 = scmp.eq.s32.totalorder %s18, 1
      %p62 = por %p60, %p61
      %p63 = scmp.ne.s32.totalorder %s52, %s53
      %p64 = scmp.eq.s32.totalorder %s18, 0
      %p65 = por %p63, %p64
      %p66 = scmp.ne.s32.totalorder %s52, %s53
      %p67 = scmp.eq.s32.totalorder %s19, 1
      %p68 = por %p66, %p67
      %p70 = scmp.ne.s32.totalorder %s53, %s69
      %p71 = scmp.eq.s32.totalorder %s19, 0
      %p72 = por %p70, %p71
      %p73 = scmp.le.s32.totalorder 1, %s13
      %p74 = scmp.lt.s32.totalorder %s13, 3
      %p75 = pnand %p73, %p74
      %p76 = pneg %p75
      // Predicated region
      $region9: #{tpu_custom_call.1} parent=5 // pred_check
        _
      $region10: #{tpu_custom_call.1} parent=5 // pred_check_branch
        %78 = sbr.rel (%p75) target = $region12
      $region11: #{tpu_custom_call.1} parent=5 // pred_region
        %s79 = ssub.s32 %s13, 1
      $region12: #{tpu_custom_call.1} parent=5 // pred_fallthru
        _
      %p80 = scmp.lt.s32.totalorder %s13, 2
      // Predicated region
      $region13: #{tpu_custom_call.1} parent=5 // pred_check
        %p81 = pneg %p80
      $region14: #{tpu_custom_call.1} parent=5 // pred_check_branch
        %83 = sbr.rel (%p81) target = $region16
      $region15: #{tpu_custom_call.1} parent=5 // pred_region
        // Predicated region
        $region17: #{tpu_custom_call.1} parent=15 // pred_check
          %p84 = pneg %p33
        $region18: #{tpu_custom_call.1} parent=15 // pred_check_branch
          %86 = sbr.rel (%p84) target = $region20
        $region19: #{tpu_custom_call.1} parent=15 // pred_region
          %s87 = sand.u32 %s23, 1
          %s88 = scalar_lea.sflag [#allocation3], %s87
          %s89 = sand.u32 %s23, 1
          %s90 = smul.addr %s89, 8
          %s91 = scalar_lea.vmem [#allocation2], %s90
          %s92 = smul.u32 4, %s13
          %s94 = ssub.s32 128, 128
          %95 = vsyncadd %s88, %s94
          %s96 = smul.addr %s92, 32
          %s97 = scalar_lea.hbm %s0, %s96
          %s98 = sshll.u32 %s91, 4
          %s99 = int_to_ptr.vmem [resolvable:$true] %s98
          %104 = dma.hbm_to_vmem [thread:$0]  %s97, 128, %s99, %s88, 32, 32, 2
        $region20: #{tpu_custom_call.1} parent=15 // pred_fallthru
          _
      $region16: #{tpu_custom_call.1} parent=5 // pred_fallthru
        _
      %p105 = scmp.le.s32.totalorder 1, %s13
      %p106 = scmp.lt.s32.totalorder %s13, 3
      %p107 = pnand %p105, %p106
      %p108 = pneg %p107
      // Predicated region
      $region21: #{tpu_custom_call.1} parent=5 // pred_check
        _
      $region22: #{tpu_custom_call.1} parent=5 // pred_check_branch
        %110 = sbr.rel (%p107) target = $region24
      $region23: #{tpu_custom_call.1} parent=5 // pred_region
        %s111 = ssub.s32 %s13, 1
        %s112 = sand.u32 %s26, 1
        %s113 = scalar_lea.sflag [#allocation3], %s112
        %s114 = sand.u32 %s26, 1
        %s115 = smul.addr %s114, 8
        %s116 = scalar_lea.vmem [#allocation2], %s115
        // Predicated region
        $region25: #{tpu_custom_call.1} parent=23 // pred_check
          %p117 = pneg %p39
        $region26: #{tpu_custom_call.1} parent=23 // pred_check_branch
          %119 = sbr.rel (%p117) target = $region28
        $region27: #{tpu_custom_call.1} parent=23 // pred_region
          %120 = dma.done %s113, 128
        $region28: #{tpu_custom_call.1} parent=23 // pred_fallthru
          _
        %s121 = sand.u32 %s26, 1
        %s122 = scalar_lea.sflag [#allocation3], %s121
        %s123 = sand.u32 %s26, 1
        %s124 = smul.addr %s123, 8
        %s125 = scalar_lea.vmem [#allocation2], %s124
        %p126 = pneg %p39
        %p127 = pneg %p36
        %p128 = pneg %p65
        %p129 = pneg %p62
        %s130 = sand.u32 %s52, 1
        %s131 = scalar_lea.sflag [#allocation4], %s130
        %s132 = sand.u32 %s52, 1
        %s133 = smul.addr %s132, 2
        %s134 = scalar_lea.vmem [#allocation5], %s133
        %s135 = smul.u32 4, %s18
        %v136 = vld [vmem:[%s116] sm:$0x3]
        %v137 = vld [vmem:[%s116 + $0x2] sm:$0x3]
        %v138 = vld [vmem:[%s116 + $0x4] sm:$0x3]
        %v139 = vld [vmem:[%s116 + $0x6] sm:$0x3]
        %v140 = vcombine.low %v136, %v138
        %v142 = vunpack.c.l.s4 1983009808
        %v143 = vunpack.c.0.s8 %v142
        %v144 = vlaneseq
        %v145 = vshrl.u32 %v144, 7
        %v146 = vsub.s32 %v143, %v145
        %v147 = vrot.slane %v140, %v146
        %v148 = vcombine.low %v137, %v139
        %v150 = vunpack.c.l.s4 1983009808
        %v151 = vunpack.c.0.s8 %v150
        %v152 = vlaneseq
        %v153 = vshrl.u32 %v152, 7
        %v154 = vsub.s32 %v151, %v153
        %v155 = vrot.slane %v148, %v154
        %v156 = vcombine.low %v147, %v155
        %v158 = vunpack.c.l.s4 1934713408
        %v159 = vunpack.c.0.s8 %v158
        %v160 = vlaneseq
        %v161 = vshrl.u32 %v160, 7
        %v162 = vsub.s32 %v159, %v161
        %v163 = vrot.slane %v156, %v162
        %v165 = vunpack.c.l.s4 1983009808
        %v166 = vunpack.c.0.s8 %v165
        %v167 = vlaneseq
        %v168 = vshrl.u32 %v167, 7
        %v169 = vsub.s32 %v166, %v168
        %v170 = vrot.slane %v163, %v169
        %v171 = vcombine.high %v163, 0.0
        %v173 = vunpack.c.l.s4 1983009808
        %v174 = vunpack.c.0.s8 %v173
        %v175 = vlaneseq
        %v176 = vshrl.u32 %v175, 7
        %v177 = vsub.s32 %v174, %v176
        %v178 = vrot.slane %v171, %v177
        %v179 = vcombine.low %v170, %v178
        %v180 = vcombine.high %v170, %v178
        %v182 = vunpack.c.l.s4 1934713408
        %v183 = vunpack.c.0.s8 %v182
        %v184 = vlaneseq
        %v185 = vshrl.u32 %v184, 7
        %v186 = vsub.s32 %v183, %v185
        %v187 = vrot.slane %v179, %v186
        %v189 = vunpack.c.l.s4 1934713408
        %v190 = vunpack.c.0.s8 %v189
        %v191 = vlaneseq
        %v192 = vshrl.u32 %v191, 7
        %v193 = vsub.s32 %v190, %v192
        %v194 = vrot.slane %v180, %v193
        %v195 = vcombine.high %v187, 0.0
        %v196 = vcombine.high %v194, 0.0
        %198 = vrot.lane.b32.xlu0 %v195, 32
        %v199 = vpop.permute.xlu0 %198
        %202 = vrot.lane.b32.xlu0 %v194, 64
        %v203 = vpop.permute.xlu0 %202
        %206 = vrot.lane.b32.xlu0 %v196, 96
        %v207 = vpop.permute.xlu0 %206
        %vm209 = vcmask 261120
        %v210 = vsel %vm209, %v187, %v199
        %vm211 = vcmask 523264
        %v212 = vsel %vm211, %v210, %v203
        %vm213 = vcmask 785408
        %v214 = vsel %vm213, %v212, %v207
        %215 = vst [vmem:[%s134] sm:$0x3] %v214
        %s216 = sand.u32 %s52, 1
        %s217 = scalar_lea.sflag [#allocation4], %s216
        %s218 = sand.u32 %s52, 1
        %s219 = smul.addr %s218, 2
        %s220 = scalar_lea.vmem [#allocation5], %s219
        // Predicated region
        $region29: #{tpu_custom_call.1} parent=23 // pred_check
          %p221 = pneg %p62
        $region30: #{tpu_custom_call.1} parent=23 // pred_check_branch
          %223 = sbr.rel (%p221) target = $region32
        $region31: #{tpu_custom_call.1} parent=23 // pred_region
          %s225 = ssub.s32 32, 32
          %226 = vsyncadd %s217, %s225
          %s227 = smul.addr %s18, 32
          %s228 = scalar_lea.hbm %s1, %s227
          %s230 = sshll.u32 %s220, 4
          %s231 = int_to_ptr.vmem [resolvable:$true] %s230
          %233 = dma.vmem_to_hbm [thread:$0]  %s231, 32, %s228, %s217
        $region32: #{tpu_custom_call.1} parent=23 // pred_fallthru
          _
      $region24: #{tpu_custom_call.1} parent=5 // pred_fallthru
        _
      %p234 = scmp.le.s32.totalorder 2, %s13
      // Predicated region
      $region33: #{tpu_custom_call.1} parent=5 // pred_check
        %p235 = pneg %p234
      $region34: #{tpu_custom_call.1} parent=5 // pred_check_branch
        %237 = sbr.rel (%p235) target = $region36
      $region35: #{tpu_custom_call.1} parent=5 // pred_region
        %s238 = ssub.s32 %s13, 2
        // Predicated region
        $region37: #{tpu_custom_call.1} parent=35 // pred_check
          %p239 = pneg %p68
        $region38: #{tpu_custom_call.1} parent=35 // pred_check_branch
          %241 = sbr.rel (%p239) target = $region40
        $region39: #{tpu_custom_call.1} parent=35 // pred_region
          %s242 = sand.u32 %s53, 1
          %s243 = scalar_lea.sflag [#allocation4], %s242
          %s244 = sand.u32 %s53, 1
          %s245 = smul.addr %s244, 2
          %s246 = scalar_lea.vmem [#allocation5], %s245
          %247 = dma.done %s243, 32
        $region40: #{tpu_custom_call.1} parent=35 // pred_fallthru
          _
      $region36: #{tpu_custom_call.1} parent=5 // pred_fallthru
        _
    $region6: #{tpu_custom_call.1} parent=1 // loop_footer
      %s17 = sadd.s32 1, %s13
    $region7: #{tpu_custom_call.1} parent=1 // loop_footer_branch
      %12 = sbr.rel target = $region3
    $region8: #{tpu_custom_call.1} parent=1 // loop_exit
      _
    %248 = vsyncpa [#allocation3], 1
    %s249 = scalar_lea.sflag [#allocation3], 1
    %250 = vsyncpa %s249, 1
    %251 = vsyncpa [#allocation4], 1
    %s252 = scalar_lea.sflag [#allocation4], 1
    %253 = vsyncpa %s252, 1

</llo_original>
